<compile_context>
chip_gen: v6e
topology: v6e:2x2x1
jax: 0.10.0
libtpu: 0.0.40
codegen_flags: <defaults>
</compile_context>

<pallas_src>
import functools
import math

import jax
import jax.numpy as jnp
from jax import lax
from jax.experimental import pallas as pl
from jax.experimental.pallas import tpu as pltpu

_LANE = 128  # lane-dense last dim -> unmasked full-width vector stores


# ---------------------------------------------------------------------------
# In-kernel counter-based PRNG (portable: plain integer ops only)
# ---------------------------------------------------------------------------
def _keep_mask(shape, seed_u32, row_offset_u32, thresh24):
    """Boolean keep-mask for one (rows, 128) tile.

    Hash of the GLOBAL flat element index (row_offset + row)*128 + lane, mixed
    with the seed -> the mask is deterministic per seed and independent of the
    tiling, so regenerating it per tile / per timestep always yields the same
    persistent mask."""
    rows, lanes = shape
    row = lax.broadcasted_iota(jnp.uint32, shape, 0)
    lane = lax.broadcasted_iota(jnp.uint32, shape, 1)
    idx = (row + row_offset_u32) * jnp.uint32(lanes) + lane
    z = idx ^ (seed_u32 * jnp.uint32(0x9E3779B9))
    # lowbias32 integer mix (good avalanche, cheap VPU work that hides
    # entirely under the DMA of this bandwidth-bound kernel).
    z = z ^ (z >> 16)
    z = z * jnp.uint32(0x7FEB352D)
    z = z ^ (z >> 15)
    z = z * jnp.uint32(0x846CA68B)
    z = z ^ (z >> 16)
    r24 = z >> 8                       # uniform in [0, 2^24)
    return r24 >= jnp.uint32(thresh24)  # keep prob = 1 - p


# ---------------------------------------------------------------------------
# Kernels
# ---------------------------------------------------------------------------
def _dropout_apply_kernel(seed_ref, x_ref, o_ref, *, tile_r, thresh24, scale):
    """out = x * mask, mask regenerated on the fly (x read + out write only)."""
    seed = seed_ref[0].astype(jnp.uint32)
    row_off = (pl.program_id(0) * tile_r).astype(jnp.uint32)
    keep = _keep_mask(x_ref.shape, seed, row_off, thresh24)
    mask_f32 = jnp.where(keep, jnp.float32(scale), jnp.float32(0.0))
    o_ref[...] = (x_ref[...].astype(jnp.float32) * mask_f32).astype(o_ref.dtype)


def _dropout_mask_kernel(seed_ref, m_ref, *, tile_r, thresh24, scale):
    """Materialize the persistent mask (values in {0, 1/(1-p)}) — debug /
    exact-module-state path; bit-identical to what the fused kernel applies."""
    seed = seed_ref[0].astype(jnp.uint32)
    row_off = (pl.program_id(0) * tile_r).astype(jnp.uint32)
    keep = _keep_mask(m_ref.shape, seed, row_off, thresh24)
    m_ref[...] = jnp.where(keep, jnp.float32(scale),
                           jnp.float32(0.0)).astype(m_ref.dtype)


# ---------------------------------------------------------------------------
# Tiling helper (pure function of total element count + dtype)
# ---------------------------------------------------------------------------
def _layout(total, itemsize, target_bytes=2 << 20):
    """Flattened (rows, 128) layout: row-tile size + padded row count.

    * sublane granularity g covers f32 (8) / bf16 (16) / int8 (32) tiling
    * tile capped at ~2 MiB -> 2 streams x 2 buffers well under scoped VMEM
      on v5e/v6e (16/32 MiB defaults) and v7x (32 MiB scoped of 64 MiB)
    * tile capped so the grid has >= 2 tiles whenever possible (pipeline
      stays full; v7x megacore gets work on both TensorCores)"""
    rows = -(-total // _LANE)
    g = max(8, 32 // max(1, itemsize))
    rows_g = -(-rows // g) * g
    max_r = max(g, (target_bytes // (_LANE * itemsize)) // g * g)
    tile_r = min(rows_g, max_r)
    if rows_g >= 2 * g and tile_r > rows_g // 2:
        tile_r = max(g, (rows_g // 2) // g * g)
    rows_padded = -(-rows // tile_r) * tile_r
    return tile_r, rows_padded


# ---------------------------------------------------------------------------
# Wrappers (module state: self.mask -> a small seed token)
# ---------------------------------------------------------------------------
def generate_dropout_mask(shape, p, seed, dtype=jnp.float32):
    """Pallas equivalent of Dropout._generate_mask: values in {0, 1/(1-p)}."""
    assert 0.0 <= p < 1.0
    total = math.prod(shape)
    itemsize = jnp.dtype(dtype).itemsize
    tile_r, rows_padded = _layout(total, itemsize)
    grid = (rows_padded // tile_r,)
    seed_arr = jnp.asarray([int(seed)], jnp.int32)

    mask2 = pl.pallas_call(
        functools.partial(_dropout_mask_kernel, tile_r=tile_r,
                          thresh24=int(p * (1 << 24)), scale=1.0 / (1.0 - p)),
        out_shape=jax.ShapeDtypeStruct((rows_padded, _LANE), dtype),
        grid=grid,
        in_specs=[pl.BlockSpec(memory_space=pltpu.MemorySpace.SMEM)],
        out_specs=pl.BlockSpec((tile_r, _LANE), lambda i: (i, 0)),
        # Hash is order-independent -> safe to shard across v7x TensorCores.
        compiler_params=pltpu.CompilerParams(
            dimension_semantics=("parallel",)),
    )(seed_arr)
    return mask2.reshape(-1)[:total].reshape(shape)


def dropout_forward(x, mask_seed=None, *, p=0.5, training=True, seed=0):
    """Forward pass of the SNN Dropout module.

    training=False -> identity (no kernel launched).
    training=True  -> if mask state is None, "generate" the persistent mask
                      (lazily, as a seed token), then out = x * mask with the
                      mask regenerated inside the kernel (no mask HBM stream).
    Returns (out, mask_seed) so the caller carries the mask across timesteps;
    reset() of the module corresponds to passing mask_seed=None again."""
    assert 0.0 <= p < 1.0
    if not training:
        return x, mask_seed

    if mask_seed is None:
        mask_seed = int(seed)   # _generate_mask: new persistent mask

    orig_shape, orig_dtype = x.shape, x.dtype
    total = x.size
    itemsize = jnp.dtype(orig_dtype).itemsize
    tile_r, rows_padded = _layout(total, itemsize)
    padded = rows_padded * _LANE

    xf = x.reshape(-1)
    if padded > total:
        xf = jnp.pad(xf, (0, padded - total))
    x2 = xf.reshape(rows_padded, _LANE)

    grid = (rows_padded // tile_r,)
    spec = pl.BlockSpec((tile_r, _LANE), lambda i: (i, 0))
    seed_arr = jnp.asarray([mask_seed], jnp.int32)

    out2 = pl.pallas_call(
        functools.partial(_dropout_apply_kernel, tile_r=tile_r,
                          thresh24=int(p * (1 << 24)), scale=1.0 / (1.0 - p)),
        out_shape=jax.ShapeDtypeStruct((rows_padded, _LANE), orig_dtype),
        grid=grid,
        in_specs=[pl.BlockSpec(memory_space=pltpu.MemorySpace.SMEM), spec],
        out_specs=spec,
        # Embarrassingly parallel row tiles -> shard across both v7x TCs.
        compiler_params=pltpu.CompilerParams(
            dimension_semantics=("parallel",)),
    )(seed_arr, x2)

    out = out2.reshape(-1)[:total].reshape(orig_shape)
    return out, mask_seed


# ---------------------------------------------------------------------------
# Demo / correctness check
# ---------------------------------------------------------------------------
if __name__ == "__main__":
    key = jax.random.PRNGKey(0)
    N, C, H, W = 2, 4, 16, 16
    p = 0.5
    seed = 1234

    kx1, kx2 = jax.random.split(key)
    x = jax.random.normal(kx1, (N, C, H, W), dtype=jnp.float32)

    # Timestep 1 (training): mask state is None -> generated (seed token).
    out1, mask_seed = dropout_forward(x, mask_seed=None, p=p, training=True,
                                      seed=seed)
    jax.block_until_ready(out1)

    # Timestep 2 (training): SAME mask reused (persistent across timesteps).
    x_t2 = x * 0.5 + jax.random.normal(kx2, (N, C, H, W), dtype=jnp.float32)
    out2, mask_seed_again = dropout_forward(x_t2, mask_seed=mask_seed, p=p,
                                            training=True)
    jax.block_until_ready(out2)

    # Eval mode: identity, no kernel.
    out_eval, _ = dropout_forward(x, mask_seed=None, p=p, training=False)

    # Materialized mask (exact module-state / debug path) for the checks —
    # bit-identical to what the fused apply kernel used.
    mask = generate_dropout_mask(x.shape, p, mask_seed)
    jax.block_until_ready(mask)

    # --- checks ---
    # TODO(synk): bitwise-identical mask values to torch's RNG are not
    # reproducible; we verify the dropout-mask semantics instead.
    scale = 1.0 / (1.0 - p)
    assert bool(jnp.all((mask == 0.0) | (jnp.abs(mask - scale) < 1e-6))), \
        "mask must contain only 0 or 1/(1-p)"
    drop_frac = float(jnp.mean((mask == 0.0).astype(jnp.float32)))
    assert abs(drop_frac - p) < 0.15, f"drop fraction {drop_frac} far from p={p}"
    assert jnp.allclose(out1, x * mask, atol=1e-6)
    assert jnp.allclose(out2, x_t2 * mask, atol=1e-6)   # mask persisted
    assert mask_seed_again == mask_seed
    assert out1.dtype == x.dtype
    assert jnp.allclose(out_eval, x)

    print("KERNEL_OK")
</pallas_src>

<mosaic_0001>
module attributes {stable_mosaic.version = 11 : i64} {
  func.func @_dropout_apply_kernel(%arg0: i32, %arg1: memref<1xi32, #tpu.memory_space<smem>>, %arg2: memref<8x128xf32, #tpu.memory_space<vmem>>, %arg3: memref<8x128xf32, #tpu.memory_space<vmem>>) attributes {dimension_semantics = [#tpu.dimension_semantics<parallel>], iteration_bounds = array<i64: 2>, scalar_prefetch = 0 : i64, scratch_operands = 0 : i64, tpu.core_type = #tpu.core_type<tc>, window_params = [{transform_indices = @transform_0, window_bounds = array<i64: 1>}, {transform_indices = @transform_1, window_bounds = array<i64: 8, 128>}, {transform_indices = @transform_2, window_bounds = array<i64: 8, 128>}]} {
    %c0 = arith.constant 0 : index
    %0 = memref.load %arg1[%c0] : memref<1xi32, #tpu.memory_space<smem>>
    %c8_i32 = arith.constant 8 : i32
    %1 = arith.muli %arg0, %c8_i32 : i32
    %2 = tpu.iota {dimensions = array<i32: 0>} : vector<8x128xi32>
    %3 = tpu.iota {dimensions = array<i32: 1>} : vector<8x128xi32>
    %4 = vector.broadcast %1 : i32 to vector<8x128xi32>
    %5 = arith.addi %2, %4 : vector<8x128xi32>
    %c128_i32 = arith.constant 128 : i32
    %6 = vector.broadcast %c128_i32 : i32 to vector<8x128xi32>
    %7 = arith.muli %5, %6 : vector<8x128xi32>
    %8 = arith.addi %7, %3 : vector<8x128xi32>
    %c-1640531527_i32 = arith.constant -1640531527 : i32
    %9 = arith.muli %0, %c-1640531527_i32 : i32
    %10 = vector.broadcast %9 : i32 to vector<8x128xi32>
    %11 = arith.xori %8, %10 : vector<8x128xi32>
    %c16_i32 = arith.constant 16 : i32
    %12 = vector.broadcast %c16_i32 : i32 to vector<8x128xi32>
    %13 = arith.shrui %11, %12 : vector<8x128xi32>
    %14 = arith.xori %11, %13 : vector<8x128xi32>
    %c2146121005_i32 = arith.constant 2146121005 : i32
    %15 = vector.broadcast %c2146121005_i32 : i32 to vector<8x128xi32>
    %16 = arith.muli %14, %15 : vector<8x128xi32>
    %c15_i32 = arith.constant 15 : i32
    %17 = vector.broadcast %c15_i32 : i32 to vector<8x128xi32>
    %18 = arith.shrui %16, %17 : vector<8x128xi32>
    %19 = arith.xori %16, %18 : vector<8x128xi32>
    %c-2073254261_i32 = arith.constant -2073254261 : i32
    %20 = vector.broadcast %c-2073254261_i32 : i32 to vector<8x128xi32>
    %21 = arith.muli %19, %20 : vector<8x128xi32>
    %c16_i32_0 = arith.constant 16 : i32
    %22 = vector.broadcast %c16_i32_0 : i32 to vector<8x128xi32>
    %23 = arith.shrui %21, %22 : vector<8x128xi32>
    %24 = arith.xori %21, %23 : vector<8x128xi32>
    %c8_i32_1 = arith.constant 8 : i32
    %25 = vector.broadcast %c8_i32_1 : i32 to vector<8x128xi32>
    %26 = arith.shrui %24, %25 : vector<8x128xi32>
    %c8388608_i32 = arith.constant 8388608 : i32
    %27 = vector.broadcast %c8388608_i32 : i32 to vector<8x128xi32>
    %28 = arith.cmpi uge, %26, %27 : vector<8x128xi32>
    %cst = arith.constant 2.000000e+00 : f32
    %cst_2 = arith.constant 0.000000e+00 : f32
    %29 = vector.broadcast %cst : f32 to vector<8x128xf32>
    %30 = vector.broadcast %cst_2 : f32 to vector<8x128xf32>
    %31 = arith.select %28, %29, %30 : vector<8x128xi1>, vector<8x128xf32>
    %c0_3 = arith.constant 0 : index
    %c0_4 = arith.constant 0 : index
    %32 = vector.load %arg2[%c0_3, %c0_4] : memref<8x128xf32, #tpu.memory_space<vmem>>, vector<8x128xf32>
    %33 = arith.mulf %32, %31 : vector<8x128xf32>
    %c0_5 = arith.constant 0 : index
    %c0_6 = arith.constant 0 : index
    %34 = vector.load %arg3[%c0_5, %c0_6] : memref<8x128xf32, #tpu.memory_space<vmem>>, vector<8x128xf32>
    tpu.vector_store %arg3[%c0_5, %c0_6], %33 {strides = array<i32>} : memref<8x128xf32, #tpu.memory_space<vmem>>, vector<8x128xf32>,
    return
  }
  func.func @transform_0(%arg0: i32) -> i32 {
    %c0_i32 = arith.constant 0 : i32
    %c0_i32_0 = arith.constant 0 : i32
    return %c0_i32 : i32
  }
  func.func @transform_1(%arg0: i32) -> (i32, i32) {
    %c0_i32 = arith.constant 0 : i32
    %c0_i32_0 = arith.constant 0 : i32
    return %arg0, %c0_i32 : i32, i32
  }
  func.func @transform_2(%arg0: i32) -> (i32, i32) {
    %c0_i32 = arith.constant 0 : i32
    %c0_i32_0 = arith.constant 0 : i32
    return %arg0, %c0_i32 : i32, i32
  }
}

</mosaic_0001>

<llo_original>
// kernel: tpu_custom_call.1
$region0: #{tpu_custom_call.1}
  #allocation0 [shape = 'u32[]', space=smem, size = 0x4, offset = 0x4, fixed_abs, tag = 'smem constant byte address 0x4 - core index']
  #allocation1 [shape = 'u32[144,128]{1,0:T(1,128)}', space=vmem, size = 0x12000, scoped, tag = 'internal scratch']
  #allocation2 [shape = 's32[1]{0:T(128)S(6)}', space=smem, size = 0x200, scoped, tag = 'scoped memory for tpu_custom_call.1']
  %s0 = inlined_call_operand.<no memory space> [shape: s32[1], index: 0, kind: input, shape index: {}]
  %s1 = inlined_call_operand.hbm [shape: f32[16,128], index: 1, kind: input, shape index: {}]
  %s2 = inlined_call_operand.hbm [shape: f32[16,128], index: 2, kind: output, shape index: {}]
  %s3 = sld [smem:[#allocation0]]
  $region45: #{tpu_custom_call.1} parent=0
    _
  %s5 = ssub.s32 1, %s3
  %s6 = scalar_select 0, %s5, %s3
  %7 = sst [smem:[#allocation2]] %s0
  $region1: #{tpu_custom_call.1} parent=0
    #allocation3 [shape = 'u8[8192]{0}', space=vmem, size = 0x2000, scoped, tag = 'input window, operand 1']
    #allocation4 [shape = 's32[2]{0}', space=sflag, size = 0x8, scoped, tag = 'scoped memory for tpu_custom_call.1']
    #allocation5 [shape = 's32[2]{0}', space=sflag, size = 0x8, scoped, tag = 'scoped memory for tpu_custom_call.1']
    #allocation6 [shape = 'u8[8192]{0}', space=vmem, size = 0x2000, scoped, tag = 'output window, operand 0']
    %8 = vsyncpa [#allocation4], 0
    %s9 = scalar_lea.sflag [#allocation4], 1
    %10 = vsyncpa %s9, 0
    %11 = vsyncpa [#allocation5], 0
    %s12 = scalar_lea.sflag [#allocation5], 1
    %13 = vsyncpa %s12, 0
    loop: start=0, step=1, limit=4
    $region2: #{tpu_custom_call.1} parent=1 // loop_pre_header
      _
    $region3: #{tpu_custom_call.1} parent=1 // loop_header
      %s15 = sphi 0, %s19
      %p16 = scmp.ge.s32.totalorder %s15, 4
      %s23 = sphi 0, %s23
      %s25 = sphi 0, %s23
      %s26 = sphi 0, %s25
      %s40 = sphi 0, %s26
      %s46 = sphi 0, %s48
      %s49 = sphi 0, %s46
      %s50 = sphi 0, %s49
      %s66 = sphi 0, %s50
      %s72 = sphi 0, %s74
      %s75 = sphi 0, %s72
      %s76 = sphi 0, %s75
      %s92 = sphi 0, %s76
    $region4: #{tpu_custom_call.1} parent=1 // loop_header_branch
      %18 = sbr.rel (%p16) target = $region8
    $region5: #{tpu_custom_call.1} parent=1 // loop_body
      %s20 = ssub.s32 %s15, 1
      %s21 = ssub.s32 %s15, 2
      %s22 = sadd.s32 %s15, 1
      %s24 = sadd.s32 %s23, 1
      %p27 = scmp.eq.s32.totalorder %s15, 1
      %p28 = scmp.ne.s32.totalorder %s23, %s25
      %p29 = scmp.eq.s32.totalorder %s15, 0
      %p30 = por %p28, %p29
      %p31 = scmp.ne.s32.totalorder %s23, %s25
      %p32 = scmp.eq.s32.totalorder %s20, 1
      %p33 = por %p31, %p32
      %p34 = scmp.ne.s32.totalorder %s25, %s26
      %p35 = scmp.eq.s32.totalorder %s20, 0
      %p36 = por %p34, %p35
      %p37 = scmp.ne.s32.totalorder %s25, %s26
      %p38 = scmp.eq.s32.totalorder %s21, 1
      %p39 = por %p37, %p38
      %p41 = scmp.ne.s32.totalorder %s26, %s40
      %p42 = scmp.eq.s32.totalorder %s21, 0
      %p43 = por %p41, %p42
      %s44 = ssub.s32 %s15, %s22
      %p45 = scmp.eq.s32.totalorder %s44, 0
      %s47 = sadd.s32 %s46, 1
      %s48 = scalar_select %p45, %s46, %s47
      %p51 = pneg %p45
      %p52 = scmp.eq.s32.totalorder %s15, 1
      %p53 = por %p51, %p52
      %p54 = scmp.ne.s32.totalorder %s46, %s49
      %p55 = scmp.eq.s32.totalorder %s15, 0
      %p56 = por %p54, %p55
      %p57 = scmp.ne.s32.totalorder %s46, %s49
      %p58 = scmp.eq.s32.totalorder %s20, 1
      %p59 = por %p57, %p58
      %p60 = scmp.ne.s32.totalorder %s49, %s50
      %p61 = scmp.eq.s32.totalorder %s20, 0
      %p62 = por %p60, %p61
      %p63 = scmp.ne.s32.totalorder %s49, %s50
      %p64 = scmp.eq.s32.totalorder %s21, 1
      %p65 = por %p63, %p64
      %p67 = scmp.ne.s32.totalorder %s50, %s66
      %p68 = scmp.eq.s32.totalorder %s21, 0
      %p69 = por %p67, %p68
      %s70 = ssub.s32 %s15, %s22
      %p71 = scmp.eq.s32.totalorder %s70, 0
      %s73 = sadd.s32 %s72, 1
      %s74 = scalar_select %p71, %s72, %s73
      %p77 = pneg %p71
      %p78 = scmp.eq.s32.totalorder %s15, 1
      %p79 = por %p77, %p78
      %p80 = scmp.ne.s32.totalorder %s72, %s75
      %p81 = scmp.eq.s32.totalorder %s15, 0
      %p82 = por %p80, %p81
      %p83 = scmp.ne.s32.totalorder %s72, %s75
      %p84 = scmp.eq.s32.totalorder %s20, 1
      %p85 = por %p83, %p84
      %p86 = scmp.ne.s32.totalorder %s75, %s76
      %p87 = scmp.eq.s32.totalorder %s20, 0
      %p88 = por %p86, %p87
      %p89 = scmp.ne.s32.totalorder %s75, %s76
      %p90 = scmp.eq.s32.totalorder %s21, 1
      %p91 = por %p89, %p90
      %p93 = scmp.ne.s32.totalorder %s76, %s92
      %p94 = scmp.eq.s32.totalorder %s21, 0
      %p95 = por %p93, %p94
      %p96 = scmp.le.s32.totalorder 1, %s15
      %p97 = scmp.lt.s32.totalorder %s15, 3
      %p98 = pnand %p96, %p97
      %p99 = pneg %p98
      // Predicated region
      $region9: #{tpu_custom_call.1} parent=5 // pred_check
        _
      $region10: #{tpu_custom_call.1} parent=5 // pred_check_branch
        %101 = sbr.rel (%p98) target = $region12
      $region11: #{tpu_custom_call.1} parent=5 // pred_region
        %s102 = ssub.s32 %s15, 1
        // Predicated region
        $region13: #{tpu_custom_call.1} parent=11 // pred_check
          %p103 = pneg %p36
        $region14: #{tpu_custom_call.1} parent=11 // pred_check_branch
          %105 = sbr.rel (%p103) target = $region16
        $region15: #{tpu_custom_call.1} parent=11 // pred_region
          _
        $region16: #{tpu_custom_call.1} parent=11 // pred_fallthru
          _
      $region12: #{tpu_custom_call.1} parent=5 // pred_fallthru
        _
      %p106 = scmp.lt.s32.totalorder %s15, 2
      // Predicated region
      $region17: #{tpu_custom_call.1} parent=5 // pred_check
        %p107 = pneg %p106
      $region18: #{tpu_custom_call.1} parent=5 // pred_check_branch
        %109 = sbr.rel (%p107) target = $region20
      $region19: #{tpu_custom_call.1} parent=5 // pred_region
        // Predicated region
        $region21: #{tpu_custom_call.1} parent=19 // pred_check
          %p110 = pneg %p56
        $region22: #{tpu_custom_call.1} parent=19 // pred_check_branch
          %112 = sbr.rel (%p110) target = $region24
        $region23: #{tpu_custom_call.1} parent=19 // pred_region
          %s113 = sand.u32 %s46, 1
          %s114 = scalar_lea.sflag [#allocation4], %s113
          %s115 = sand.u32 %s46, 1
          %s116 = smul.addr %s115, 8
          %s117 = scalar_lea.vmem [#allocation3], %s116
          %s119 = ssub.s32 128, 128
          %120 = vsyncadd %s114, %s119
          %s121 = smul.addr %s15, 128
          %s122 = scalar_lea.hbm %s1, %s121
          %s124 = sshll.u32 %s117, 4
          %s125 = int_to_ptr.vmem [resolvable:$true] %s124
          %127 = dma.hbm_to_vmem [thread:$0]  %s122, 128, %s125, %s114
        $region24: #{tpu_custom_call.1} parent=19 // pred_fallthru
          _
      $region20: #{tpu_custom_call.1} parent=5 // pred_fallthru
        _
      %p128 = scmp.le.s32.totalorder 1, %s15
      %p129 = scmp.lt.s32.totalorder %s15, 3
      %p130 = pnand %p128, %p129
      %p131 = pneg %p130
      // Predicated region
      $region25: #{tpu_custom_call.1} parent=5 // pred_check
        _
      $region26: #{tpu_custom_call.1} parent=5 // pred_check_branch
        %133 = sbr.rel (%p130) target = $region28
      $region27: #{tpu_custom_call.1} parent=5 // pred_region
        %s134 = ssub.s32 %s15, 1
        %s135 = sand.u32 %s49, 1
        %s136 = scalar_lea.sflag [#allocation4], %s135
        %s137 = sand.u32 %s49, 1
        %s138 = smul.addr %s137, 8
        %s139 = scalar_lea.vmem [#allocation3], %s138
        // Predicated region
        $region29: #{tpu_custom_call.1} parent=27 // pred_check
          %p140 = pneg %p62
        $region30: #{tpu_custom_call.1} parent=27 // pred_check_branch
          %142 = sbr.rel (%p140) target = $region32
        $region31: #{tpu_custom_call.1} parent=27 // pred_region
          %143 = dma.done %s136, 128
        $region32: #{tpu_custom_call.1} parent=27 // pred_fallthru
          _
        %p144 = pneg %p36
        %p145 = pneg %p33
        %s146 = sand.u32 %s49, 1
        %s147 = scalar_lea.sflag [#allocation4], %s146
        %s148 = sand.u32 %s49, 1
        %s149 = smul.addr %s148, 8
        %s150 = scalar_lea.vmem [#allocation3], %s149
        %p151 = pneg %p62
        %p152 = pneg %p59
        %p153 = pneg %p88
        %p154 = pneg %p85
        %s155 = sand.u32 %s75, 1
        %s156 = scalar_lea.sflag [#allocation5], %s155
        %s157 = sand.u32 %s75, 1
        %s158 = smul.addr %s157, 8
        %s159 = scalar_lea.vmem [#allocation6], %s158
        %s160 = sld [smem:[#allocation2]]
        %s161 = smul.u32 %s20, 8
        %v162 = vlaneseq
        %v163 = vshrl.u32 %v162, 7
        %v164 = vlaneseq
        %v165 = vand.u32 %v164, 127
        %v166 = vstv %s161
        %v167 = vadd.s32 %v163, %v166
        %v168 = vmul.u32 %v167, 128
        %v169 = vadd.s32 %v168, %v165
        %s170 = smul.u32 %s160, 2654435769
        %v171 = vstv %s170
        %v172 = vxor.u32 %v169, %v171
        %v173 = vshrl.u32 %v172, 16
        %v174 = vxor.u32 %v172, %v173
        %v175 = vmul.u32 %v174, 2146121005
        %v176 = vshrl.u32 %v175, 15
        %v177 = vxor.u32 %v175, %v176
        %v178 = vmul.u32 %v177, 2221713035
        %v179 = vshrl.u32 %v178, 16
        %v180 = vxor.u32 %v178, %v179
        %v181 = vshrl.u32 %v180, 8
        %vm182 = vcmp.ge.u32.totalorder %v181, 8388608
        %v183 = vsel %vm182, 2.0, 0.0
        %v184 = vld [vmem:[%s139] sm:$0xff]
        %v185 = vmul.f32 %v184, %v183
        %186 = vst [vmem:[%s159] sm:$0xff] %v185
        %s187 = sand.u32 %s75, 1
        %s188 = scalar_lea.sflag [#allocation5], %s187
        %s189 = sand.u32 %s75, 1
        %s190 = smul.addr %s189, 8
        %s191 = scalar_lea.vmem [#allocation6], %s190
        // Predicated region
        $region33: #{tpu_custom_call.1} parent=27 // pred_check
          %p192 = pneg %p85
        $region34: #{tpu_custom_call.1} parent=27 // pred_check_branch
          %194 = sbr.rel (%p192) target = $region36
        $region35: #{tpu_custom_call.1} parent=27 // pred_region
          %s196 = ssub.s32 128, 128
          %197 = vsyncadd %s188, %s196
          %s198 = smul.addr %s20, 128
          %s199 = scalar_lea.hbm %s2, %s198
          %s201 = sshll.u32 %s191, 4
          %s202 = int_to_ptr.vmem [resolvable:$true] %s201
          %204 = dma.vmem_to_hbm [thread:$0]  %s202, 128, %s199, %s188
        $region36: #{tpu_custom_call.1} parent=27 // pred_fallthru
          _
      $region28: #{tpu_custom_call.1} parent=5 // pred_fallthru
        _
      %p205 = scmp.le.s32.totalorder 2, %s15
      // Predicated region
      $region37: #{tpu_custom_call.1} parent=5 // pred_check
        %p206 = pneg %p205
      $region38: #{tpu_custom_call.1} parent=5 // pred_check_branch
        %208 = sbr.rel (%p206) target = $region40
      $region39: #{tpu_custom_call.1} parent=5 // pred_region
        %s209 = ssub.s32 %s15, 2
        // Predicated region
        $region41: #{tpu_custom_call.1} parent=39 // pred_check
          %p210 = pneg %p91
        $region42: #{tpu_custom_call.1} parent=39 // pred_check_branch
          %212 = sbr.rel (%p210) target = $region44
        $region43: #{tpu_custom_call.1} parent=39 // pred_region
          %s213 = sand.u32 %s76, 1
          %s214 = scalar_lea.sflag [#allocation5], %s213
          %s215 = sand.u32 %s76, 1
          %s216 = smul.addr %s215, 8
          %s217 = scalar_lea.vmem [#allocation6], %s216
          %218 = dma.done %s214, 128
        $region44: #{tpu_custom_call.1} parent=39 // pred_fallthru
          _
      $region40: #{tpu_custom_call.1} parent=5 // pred_fallthru
        _
    $region6: #{tpu_custom_call.1} parent=1 // loop_footer
      %s19 = sadd.s32 1, %s15
    $region7: #{tpu_custom_call.1} parent=1 // loop_footer_branch
      %14 = sbr.rel target = $region3
    $region8: #{tpu_custom_call.1} parent=1 // loop_exit
      _
    %219 = vsyncpa [#allocation4], 1
    %s220 = scalar_lea.sflag [#allocation4], 1
    %221 = vsyncpa %s220, 1
    %222 = vsyncpa [#allocation5], 1
    %s223 = scalar_lea.sflag [#allocation5], 1
    %224 = vsyncpa %s223, 1

</llo_original>
